<compile_context>
chip_gen: v7x
topology: tpu7x:2x2x1
jax: 0.10.0
libtpu: 0.0.40
codegen_flags: <defaults>
</compile_context>

<pallas_src>
import math
from functools import partial

import jax
import jax.numpy as jnp
from jax.experimental import pallas as pl
from jax.experimental.pallas import tpu as pltpu

_INV_SQRT2 = 1.0 / math.sqrt(2.0)
_SQRT_2_OVER_PI = math.sqrt(2.0 / math.pi)


def _gelu(x, approximate):
    if approximate:
        # tanh approximation (HF "gelu_new"/"gelu_pytorch_tanh") -> single EUP tanh
        return 0.5 * x * (1.0 + jnp.tanh(_SQRT_2_OVER_PI * (x + 0.044715 * x * x * x)))
    # exact erf formulation: PyTorch nn.GELU default / HF ACT2FN["gelu"]
    return 0.5 * x * (1.0 + jax.lax.erf(x * _INV_SQRT2))


# ----------------------------- kernels -----------------------------
def _head_kernel_resident(x_ref, w_ref, b_ref, g_ref, beta_ref, o_ref, *,
                          eps, approximate_gelu):
    # dense: (tm, H) @ (H, H) on the MXU; bf16 operands, f32 accumulation
    a = x_ref[...].astype(jnp.bfloat16)
    h = jnp.dot(a, w_ref[...], preferred_element_type=jnp.float32)
    h = h + b_ref[...]                                   # bias (f32)
    h = _gelu(h, approximate_gelu)                       # activation (f32)
    # LayerNorm over the hidden (lane) axis in f32
    mu = jnp.mean(h, axis=-1, keepdims=True)
    c = h - mu
    var = jnp.mean(c * c, axis=-1, keepdims=True)
    y = c * jax.lax.rsqrt(var + eps) * g_ref[...] + beta_ref[...]
    o_ref[...] = y.astype(o_ref.dtype)


def _head_kernel_ktiled(x_ref, w_ref, b_ref, g_ref, beta_ref, o_ref, acc_ref, *,
                        eps, approximate_gelu):
    # K-tiled fallback for hidden sizes whose resident weight would not fit VMEM.
    k = pl.program_id(1)

    @pl.when(k == 0)
    def _():
        acc_ref[...] = jnp.zeros_like(acc_ref)

    a = x_ref[...].astype(jnp.bfloat16)
    acc_ref[...] += jnp.dot(a, w_ref[...], preferred_element_type=jnp.float32)

    @pl.when(k == pl.num_programs(1) - 1)
    def _():
        h = acc_ref[...] + b_ref[...]
        h = _gelu(h, approximate_gelu)
        mu = jnp.mean(h, axis=-1, keepdims=True)
        c = h - mu
        var = jnp.mean(c * c, axis=-1, keepdims=True)
        y = c * jax.lax.rsqrt(var + eps) * g_ref[...] + beta_ref[...]
        o_ref[...] = y.astype(o_ref.dtype)


# ----------------------------- helpers -----------------------------
def _const_spec(shape):
    """Grid-invariant operand: constant index_map + single buffering (saves VMEM)."""
    index_map = lambda *_: (0,) * len(shape)
    try:
        return pl.BlockSpec(shape, index_map, pipeline_mode=pl.Buffered(1))
    except Exception:  # signature without pipeline_mode support
        return pl.BlockSpec(shape, index_map)


def _device_kind():
    try:
        return jax.devices()[0].device_kind.lower()
    except Exception:
        return ""


def _vmem_capacity_bytes():
    try:
        return int(pltpu.get_tpu_info().vmem_capacity_bytes)
    except Exception:
        return 64 * 2**20   # conservative (v7x per-TensorCore)


def _pick_tile_m(m, *, two_tc, mxu_align, cap):
    """Sublane(16)-aligned M tile; MXU-aligned when possible; split only on 2-TC parts."""
    if m <= 16:
        return 16
    tm = min(cap, m)
    if tm >= mxu_align:
        tm = (tm // mxu_align) * mxu_align          # full MXU passes on the M axis
    else:
        tm = max(16, (tm // 16) * 16)               # bf16 sublane packing: never 8-row tiles
    if two_tc and pl.cdiv(m, tm) < 2:               # keep both v7x TensorCores busy
        half = max(16, -(-((m + 1) // 2) // 16) * 16)
        tm = min(tm, half)
    return int(tm)


# ----------------------------- parameter prep (one-time) -----------------------------
def prepare_bert_head_params(dense_w, dense_b, ln_w, ln_b):
    """Hoisted out of the per-call hot path: transpose the PyTorch (out, in) dense weight and
    cast it to bf16 for the MXU once; reshape the per-channel vectors to (1, H) f32."""
    H = dense_w.shape[0]
    w_t_bf16 = jnp.asarray(dense_w, jnp.float32).T.astype(jnp.bfloat16)   # (H_in, H_out)
    bias = jnp.asarray(dense_b, jnp.float32).reshape(1, H)
    gamma = jnp.asarray(ln_w, jnp.float32).reshape(1, H)
    beta = jnp.asarray(ln_b, jnp.float32).reshape(1, H)
    return w_t_bf16, bias, gamma, beta


# ----------------------------- wrapper -----------------------------
def bert_prediction_head_transform(x, w_t_bf16, bias, gamma, beta, *,
                                   eps=1e-12, out_dtype=None, approximate_gelu=False):
    """x: (..., H).  w_t_bf16: (H_in, H_out) bf16 (pre-transposed).  Returns (..., H)."""
    orig_shape = x.shape
    H_in, H = w_t_bf16.shape
    assert orig_shape[-1] == H_in == H, (orig_shape, w_t_bf16.shape)

    out_dtype = x.dtype if out_dtype is None else jnp.dtype(out_dtype)

    # Flatten all leading dims onto the matmul M axis. No pad / cast passes here.
    x2 = x.reshape(-1, H_in)
    M = x2.shape[0]

    kind = _device_kind()
    two_tc = "7" in kind                                   # v7x: 2 TensorCores / chip
    is_v5e = ("v5 lite" in kind) or ("v5e" in kind)
    mxu_align = 128 if is_v5e else 256
    cap = 512 if is_v5e else 256
    tm = _pick_tile_m(M, two_tc=two_tc, mxu_align=mxu_align, cap=cap)
    grid_m = pl.cdiv(M, tm)                                 # ragged last block is masked

    x_bytes = jnp.dtype(x.dtype).itemsize
    o_bytes = jnp.dtype(out_dtype).itemsize
    vmem_cap = _vmem_capacity_bytes()

    # VMEM needed by the weight-resident plan: single-buffered bf16 weight +
    # double-buffered x / out tiles + the small (1, H) vectors.
    resident_need = H * H * 2 + 2 * tm * H * (x_bytes + o_bytes) + 2 * 3 * H * 4
    use_resident = resident_need <= vmem_cap - (8 << 20)

    tk = next((t for t in (2048, 1024, 512, 256, 128) if H_in % t == 0), None)
    if not use_resident and tk is None:
        # TODO(synk): ragged-K tiling not implemented; fall back to the resident plan.
        use_resident = True

    cost = pl.CostEstimate(
        flops=2 * M * H * H,
        transcendentals=M * H,
        bytes_accessed=M * H * x_bytes + H * H * 2 + 3 * H * 4 + M * H * o_bytes,
    )

    if use_resident:
        vmem_limit = int(min(vmem_cap, max(resident_need + (16 << 20), 32 << 20)))
        kernel = partial(_head_kernel_resident, eps=eps, approximate_gelu=approximate_gelu)
        out = pl.pallas_call(
            kernel,
            out_shape=jax.ShapeDtypeStruct((M, H), out_dtype),
            grid=(grid_m,),
            in_specs=[
                pl.BlockSpec((tm, H_in), lambda i: (i, 0)),   # x tile
                _const_spec((H_in, H)),                       # dense weight (VMEM-resident)
                _const_spec((1, H)),                          # dense bias
                _const_spec((1, H)),                          # LN gamma
                _const_spec((1, H)),                          # LN beta
            ],
            out_specs=pl.BlockSpec((tm, H), lambda i: (i, 0)),
            compiler_params=pltpu.CompilerParams(
                dimension_semantics=("parallel",),
                vmem_limit_bytes=vmem_limit),
            cost_estimate=cost,
        )(x2, w_t_bf16, bias, gamma, beta)
    else:
        grid_k = H_in // tk
        ktiled_need = (2 * tm * tk * x_bytes + 2 * tk * H * 2 + tm * H * 4
                       + 2 * tm * H * o_bytes + 2 * 3 * H * 4)
        vmem_limit = int(min(vmem_cap, max(ktiled_need + (16 << 20), 32 << 20)))
        kernel = partial(_head_kernel_ktiled, eps=eps, approximate_gelu=approximate_gelu)
        out = pl.pallas_call(
            kernel,
            out_shape=jax.ShapeDtypeStruct((M, H), out_dtype),
            grid=(grid_m, grid_k),
            in_specs=[
                pl.BlockSpec((tm, tk), lambda i, k: (i, k)),   # x K-slab
                pl.BlockSpec((tk, H), lambda i, k: (k, 0)),    # weight K-slab
                _const_spec((1, H)),
                _const_spec((1, H)),
                _const_spec((1, H)),
            ],
            out_specs=pl.BlockSpec((tm, H), lambda i, k: (i, 0)),
            scratch_shapes=[pltpu.VMEM((tm, H), jnp.float32)],
            compiler_params=pltpu.CompilerParams(
                dimension_semantics=("parallel", "arbitrary"),
                vmem_limit_bytes=vmem_limit),
            cost_estimate=cost,
        )(x2, w_t_bf16, bias, gamma, beta)

    return out.reshape(orig_shape[:-1] + (H,))


# ----------------------------- pure-f32 JAX reference -----------------------------
def _reference_f32(x, dense_w, dense_b, ln_w, ln_b, eps=1e-12):
    h = jnp.einsum("...i,oi->...o", x, dense_w, preferred_element_type=jnp.float32) + dense_b
    h = _gelu(h, False)
    mu = jnp.mean(h, axis=-1, keepdims=True)
    var = jnp.mean((h - mu) ** 2, axis=-1, keepdims=True)
    return (h - mu) * jax.lax.rsqrt(var + eps) * ln_w + ln_b


# ----------------------------- main -----------------------------
if __name__ == "__main__":
    B, S, H = 2, 8, 128                                   # small BERT-like shapes
    key = jax.random.PRNGKey(0)
    kx, kw, kb, kg, kbeta = jax.random.split(key, 5)

    x = jax.random.normal(kx, (B, S, H), jnp.float32)
    dense_w = 0.02 * jax.random.normal(kw, (H, H), jnp.float32)   # PyTorch (out, in) layout
    dense_b = 0.02 * jax.random.normal(kb, (H,), jnp.float32)
    ln_w = 1.0 + 0.02 * jax.random.normal(kg, (H,), jnp.float32)
    ln_b = 0.02 * jax.random.normal(kbeta, (H,), jnp.float32)

    # One-time parameter prep (transpose + bf16 cast hoisted out of the hot path).
    params = prepare_bert_head_params(dense_w, dense_b, ln_w, ln_b)

    fwd = jax.jit(bert_prediction_head_transform)
    out = fwd(x, *params)
    jax.block_until_ready(out)

    assert out.shape == (B, S, H), out.shape
    assert out.dtype == x.dtype, out.dtype
    assert bool(jnp.all(jnp.isfinite(out)))

    ref = _reference_f32(x, dense_w, dense_b, ln_w, ln_b)
    err = float(jnp.max(jnp.abs(out.astype(jnp.float32) - ref)))
    assert err < 5e-2, f"max abs error vs f32 reference: {err}"

    print("KERNEL_OK")
</pallas_src>

<mosaic_0001>
module attributes {stable_mosaic.version = 11 : i64} {
  func.func @_head_kernel_resident(%arg0: i32, %arg1: memref<16x128xf32, #tpu.memory_space<vmem>>, %arg2: memref<128x128xbf16, #tpu.memory_space<vmem>>, %arg3: memref<1x128xf32, #tpu.memory_space<vmem>>, %arg4: memref<1x128xf32, #tpu.memory_space<vmem>>, %arg5: memref<1x128xf32, #tpu.memory_space<vmem>>, %arg6: memref<16x128xf32, #tpu.memory_space<vmem>>) attributes {dimension_semantics = [#tpu.dimension_semantics<parallel>], iteration_bounds = array<i64: 1>, scalar_prefetch = 0 : i64, scratch_operands = 0 : i64, tpu.core_type = #tpu.core_type<tc>, window_params = [{transform_indices = @transform_0, window_bounds = array<i64: 16, 128>}, {pipeline_mode = #tpu.pipeline_mode<synchronous>, transform_indices = @transform_1, window_bounds = array<i64: 128, 128>}, {pipeline_mode = #tpu.pipeline_mode<synchronous>, transform_indices = @transform_2, window_bounds = array<i64: 1, 128>}, {pipeline_mode = #tpu.pipeline_mode<synchronous>, transform_indices = @transform_3, window_bounds = array<i64: 1, 128>}, {pipeline_mode = #tpu.pipeline_mode<synchronous>, transform_indices = @transform_4, window_bounds = array<i64: 1, 128>}, {transform_indices = @transform_5, window_bounds = array<i64: 16, 128>}]} {
    %c0 = arith.constant 0 : index
    %c0_0 = arith.constant 0 : index
    %0 = vector.load %arg1[%c0, %c0_0] : memref<16x128xf32, #tpu.memory_space<vmem>>, vector<16x128xf32>
    %1 = arith.truncf %0 : vector<16x128xf32> to vector<16x128xbf16>
    %c0_1 = arith.constant 0 : index
    %c0_2 = arith.constant 0 : index
    %2 = vector.load %arg2[%c0_1, %c0_2] : memref<128x128xbf16, #tpu.memory_space<vmem>>, vector<128x128xbf16>
    %cst = arith.constant dense<0.000000e+00> : vector<16x128xf32>
    %3 = tpu.matmul %1, %2, %cst {dimension_numbers = #tpu.dot_dimension_numbers<[1], [0], [0], [1], [0, 0, 1, 1], [], []>} : vector<16x128xbf16>, vector<128x128xbf16>, vector<16x128xf32> -> vector<16x128xf32>
    %c0_3 = arith.constant 0 : index
    %c0_4 = arith.constant 0 : index
    %4 = vector.load %arg3[%c0_3, %c0_4] : memref<1x128xf32, #tpu.memory_space<vmem>>, vector<1x128xf32>
    %5 = vector.broadcast %4 : vector<1x128xf32> to vector<16x128xf32>
    %6 = arith.addf %3, %5 : vector<16x128xf32>
    %cst_5 = arith.constant 5.000000e-01 : f32
    %7 = vector.broadcast %cst_5 : f32 to vector<16x128xf32>
    %8 = arith.mulf %7, %6 : vector<16x128xf32>
    %cst_6 = arith.constant 0.707106769 : f32
    %9 = vector.broadcast %cst_6 : f32 to vector<16x128xf32>
    %10 = arith.mulf %6, %9 : vector<16x128xf32>
    %11 = math.erf %10 : vector<16x128xf32>
    %cst_7 = arith.constant 1.000000e+00 : f32
    %12 = vector.broadcast %cst_7 : f32 to vector<16x128xf32>
    %13 = arith.addf %12, %11 : vector<16x128xf32>
    %14 = arith.mulf %8, %13 : vector<16x128xf32>
    %cst_8 = arith.constant dense<0.000000e+00> : vector<16xf32>
    %15 = vector.multi_reduction <add>, %14, %cst_8 [1] : vector<16x128xf32> to vector<16xf32>
    %16 = vector.shape_cast %15 : vector<16xf32> to vector<16x1xf32>
    %cst_9 = arith.constant 1.280000e+02 : f32
    %17 = vector.broadcast %cst_9 : f32 to vector<16x1xf32>
    %18 = arith.divf %16, %17 : vector<16x1xf32>
    %19 = vector.broadcast %18 : vector<16x1xf32> to vector<16x128xf32>
    %20 = arith.subf %14, %19 : vector<16x128xf32>
    %21 = arith.mulf %20, %20 : vector<16x128xf32>
    %cst_10 = arith.constant dense<0.000000e+00> : vector<16xf32>
    %22 = vector.multi_reduction <add>, %21, %cst_10 [1] : vector<16x128xf32> to vector<16xf32>
    %23 = vector.shape_cast %22 : vector<16xf32> to vector<16x1xf32>
    %cst_11 = arith.constant 1.280000e+02 : f32
    %24 = vector.broadcast %cst_11 : f32 to vector<16x1xf32>
    %25 = arith.divf %23, %24 : vector<16x1xf32>
    %cst_12 = arith.constant 9.99999996E-13 : f32
    %26 = vector.broadcast %cst_12 : f32 to vector<16x1xf32>
    %27 = arith.addf %25, %26 : vector<16x1xf32>
    %28 = math.rsqrt %27 : vector<16x1xf32>
    %29 = vector.broadcast %28 : vector<16x1xf32> to vector<16x128xf32>
    %30 = arith.mulf %20, %29 : vector<16x128xf32>
    %c0_13 = arith.constant 0 : index
    %c0_14 = arith.constant 0 : index
    %31 = vector.load %arg4[%c0_13, %c0_14] : memref<1x128xf32, #tpu.memory_space<vmem>>, vector<1x128xf32>
    %32 = vector.broadcast %31 : vector<1x128xf32> to vector<16x128xf32>
    %33 = arith.mulf %30, %32 : vector<16x128xf32>
    %c0_15 = arith.constant 0 : index
    %c0_16 = arith.constant 0 : index
    %34 = vector.load %arg5[%c0_15, %c0_16] : memref<1x128xf32, #tpu.memory_space<vmem>>, vector<1x128xf32>
    %35 = vector.broadcast %34 : vector<1x128xf32> to vector<16x128xf32>
    %36 = arith.addf %33, %35 : vector<16x128xf32>
    %c0_17 = arith.constant 0 : index
    %c0_18 = arith.constant 0 : index
    %37 = vector.load %arg6[%c0_17, %c0_18] : memref<16x128xf32, #tpu.memory_space<vmem>>, vector<16x128xf32>
    tpu.vector_store %arg6[%c0_17, %c0_18], %36 {strides = array<i32>} : memref<16x128xf32, #tpu.memory_space<vmem>>, vector<16x128xf32>,
    return
  }
  func.func @transform_0(%arg0: i32) -> (i32, i32) {
    %c0_i32 = arith.constant 0 : i32
    %c0_i32_0 = arith.constant 0 : i32
    return %arg0, %c0_i32 : i32, i32
  }
  func.func @transform_1(%arg0: i32) -> (i32, i32) {
    %c0_i32 = arith.constant 0 : i32
    %c0_i32_0 = arith.constant 0 : i32
    %c0_i32_1 = arith.constant 0 : i32
    return %c0_i32, %c0_i32_0 : i32, i32
  }
  func.func @transform_2(%arg0: i32) -> (i32, i32) {
    %c0_i32 = arith.constant 0 : i32
    %c0_i32_0 = arith.constant 0 : i32
    %c0_i32_1 = arith.constant 0 : i32
    return %c0_i32, %c0_i32_0 : i32, i32
  }
  func.func @transform_3(%arg0: i32) -> (i32, i32) {
    %c0_i32 = arith.constant 0 : i32
    %c0_i32_0 = arith.constant 0 : i32
    %c0_i32_1 = arith.constant 0 : i32
    return %c0_i32, %c0_i32_0 : i32, i32
  }
  func.func @transform_4(%arg0: i32) -> (i32, i32) {
    %c0_i32 = arith.constant 0 : i32
    %c0_i32_0 = arith.constant 0 : i32
    %c0_i32_1 = arith.constant 0 : i32
    return %c0_i32, %c0_i32_0 : i32, i32
  }
  func.func @transform_5(%arg0: i32) -> (i32, i32) {
    %c0_i32 = arith.constant 0 : i32
    %c0_i32_0 = arith.constant 0 : i32
    return %arg0, %c0_i32 : i32, i32
  }
}

</mosaic_0001>

<llo_original>
// kernel: bert_prediction_head_transform.1
$region0: #{bert_prediction_head_transform.1}
  #allocation0 [shape = 'u32[]', space=smem, size = 0x4, offset = 0x4, fixed_abs, tag = 'smem constant byte address 0x4 - core index']
  #allocation1 [shape = 'u32[144,128]{1,0:T(1,128)}', space=vmem, size = 0x12000, scoped, tag = 'internal scratch']
  %s0 = inlined_call_operand.hbm [shape: f32[16,128], index: 0, kind: input, shape index: {}]
  %s1 = inlined_call_operand.hbm [shape: bf16[128,128], index: 1, kind: input, shape index: {}]
  %s2 = inlined_call_operand.vmem [shape: f32[1,128], index: 2, kind: input, shape index: {}]
  %s3 = inlined_call_operand.vmem [shape: f32[1,128], index: 3, kind: input, shape index: {}]
  %s4 = inlined_call_operand.vmem [shape: f32[1,128], index: 4, kind: input, shape index: {}]
  %s5 = inlined_call_operand.hbm [shape: f32[16,128], index: 5, kind: output, shape index: {}]
  %s6 = sld [smem:[#allocation0]]
  $region38: #{bert_prediction_head_transform.1} parent=0
    _
  %s8 = ssub.s32 1, %s6
  %s9 = scalar_select 0, %s8, %s6
  $region1: #{bert_prediction_head_transform.1} parent=0
    #allocation2 [shape = 'u8[8192]{0}', space=vmem, size = 0x2000, scoped, tag = 'input window, operand 0, single buffered']
    #allocation3 [shape = 's32[1]{0}', space=sflag, size = 0x4, scoped, tag = 'scoped memory for bert_prediction_head_transform.1']
    #allocation4 [shape = 's32[1]{0}', space=sflag, size = 0x4, scoped, tag = 'scoped memory for bert_prediction_head_transform.1']
    #allocation5 [shape = 'u8[32768]{0}', space=vmem, size = 0x8000, scoped, tag = 'input window, operand 1, single buffered']
    #allocation6 [shape = 's32[1]{0}', space=sflag, size = 0x4, scoped, tag = 'scoped memory for bert_prediction_head_transform.1']
    #allocation7 [shape = 'u8[8192]{0}', space=vmem, size = 0x2000, scoped, tag = 'output window, operand 0, single buffered']
    %10 = vsyncpa [#allocation3], 0
    %11 = vsyncpa [#allocation6], 0
    %12 = vsyncpa [#allocation4], 0
    // Predicated region
    $region2: #{bert_prediction_head_transform.1} parent=1 // pred_check
      _
    $region3: #{bert_prediction_head_transform.1} parent=1 // pred_check_branch
      %14 = sbr.rel (0) target = $region5
    $region4: #{bert_prediction_head_transform.1} parent=1 // pred_region
      %s16 = ssub.s32 256, 256
      %17 = vsyncadd [#allocation3], %s16
      %s18 = sshll.u32 [#allocation2], 4
      %s19 = int_to_ptr.vmem [resolvable:$true] %s18
      %24 = dma.hbm_to_vmem [thread:$0]  %s0, 256, %s19, [#allocation3], 128, 128, 8
    $region5: #{bert_prediction_head_transform.1} parent=1 // pred_fallthru
      _
    // Predicated region
    $region6: #{bert_prediction_head_transform.1} parent=1 // pred_check
      _
    $region7: #{bert_prediction_head_transform.1} parent=1 // pred_check_branch
      %26 = sbr.rel (0) target = $region9
    $region8: #{bert_prediction_head_transform.1} parent=1 // pred_region
      %s28 = ssub.s32 1024, 1024
      %29 = vsyncadd [#allocation6], %s28
      %s30 = sshll.u32 [#allocation5], 4
      %s31 = int_to_ptr.vmem [resolvable:$true] %s30
      %36 = dma.hbm_to_vmem [thread:$0]  %s1, 1024, %s31, [#allocation6], 64, 64, 4
    $region9: #{bert_prediction_head_transform.1} parent=1 // pred_fallthru
      _
    // Predicated region
    $region10: #{bert_prediction_head_transform.1} parent=1 // pred_check
      _
    $region11: #{bert_prediction_head_transform.1} parent=1 // pred_check_branch
      %38 = sbr.rel (0) target = $region13
    $region12: #{bert_prediction_head_transform.1} parent=1 // pred_region
      _
    $region13: #{bert_prediction_head_transform.1} parent=1 // pred_fallthru
      _
    // Predicated region
    $region14: #{bert_prediction_head_transform.1} parent=1 // pred_check
      _
    $region15: #{bert_prediction_head_transform.1} parent=1 // pred_check_branch
      %40 = sbr.rel (0) target = $region17
    $region16: #{bert_prediction_head_transform.1} parent=1 // pred_region
      _
    $region17: #{bert_prediction_head_transform.1} parent=1 // pred_fallthru
      _
    // Predicated region
    $region18: #{bert_prediction_head_transform.1} parent=1 // pred_check
      _
    $region19: #{bert_prediction_head_transform.1} parent=1 // pred_check_branch
      %42 = sbr.rel (0) target = $region21
    $region20: #{bert_prediction_head_transform.1} parent=1 // pred_region
      _
    $region21: #{bert_prediction_head_transform.1} parent=1 // pred_fallthru
      _
    // Predicated region
    $region22: #{bert_prediction_head_transform.1} parent=1 // pred_check
      _
    $region23: #{bert_prediction_head_transform.1} parent=1 // pred_check_branch
      %44 = sbr.rel (0) target = $region25
    $region24: #{bert_prediction_head_transform.1} parent=1 // pred_region
      %45 = dma.done [#allocation3], 256
    $region25: #{bert_prediction_head_transform.1} parent=1 // pred_fallthru
      _
    // Predicated region
    $region26: #{bert_prediction_head_transform.1} parent=1 // pred_check
      _
    $region27: #{bert_prediction_head_transform.1} parent=1 // pred_check_branch
      %47 = sbr.rel (0) target = $region29
    $region28: #{bert_prediction_head_transform.1} parent=1 // pred_region
      %48 = dma.done [#allocation6], 1024
    $region29: #{bert_prediction_head_transform.1} parent=1 // pred_fallthru
      _
    %v50 = vld [vmem:[#allocation2] sm:$0xff]
    %v51 = vld [vmem:[#allocation2 + $0x8] sm:$0xff]
    %v52 = vpack.c.bf16 %v51, %v50
    %v53 = vld [vmem:[#allocation5] sm:$0xf]
    %v54 = vld [vmem:[#allocation5 + $0x4] sm:$0xf]
    %v55 = vld [vmem:[#allocation5 + $0x8] sm:$0xf]
    %v56 = vld [vmem:[#allocation5 + $0xc] sm:$0xf]
    %v57 = vld [vmem:[#allocation5 + $0x10] sm:$0xf]
    %v58 = vld [vmem:[#allocation5 + $0x14] sm:$0xf]
    %v59 = vld [vmem:[#allocation5 + $0x18] sm:$0xf]
    %v60 = vld [vmem:[#allocation5 + $0x1c] sm:$0xf]
    %v61 = vld [vmem:[#allocation5 + $0x20] sm:$0xf]
    %v62 = vld [vmem:[#allocation5 + $0x24] sm:$0xf]
    %v63 = vld [vmem:[#allocation5 + $0x28] sm:$0xf]
    %v64 = vld [vmem:[#allocation5 + $0x2c] sm:$0xf]
    %v65 = vld [vmem:[#allocation5 + $0x30] sm:$0xf]
    %v66 = vld [vmem:[#allocation5 + $0x34] sm:$0xf]
    %v67 = vld [vmem:[#allocation5 + $0x38] sm:$0xf]
    %v68 = vld [vmem:[#allocation5 + $0x3c] sm:$0xf]
    %v69 = vld [vmem:[%s2] sm:$0x1]
    %v71 = vlaneseq
    %v72 = vshrl.u32 %v71, 7
    %v73 = vsub.s32 0, %v72
    %v74 = vrot.slane %v69, %v73
    %v92 = vunpack.c.l.b16 %v53
    %v93 = vunpack.c.l.b16 %v54
    %v94 = vunpack.c.l.b16 %v55
    %v95 = vunpack.c.l.b16 %v56
    %v96 = vunpack.c.l.b16 %v57
    %v97 = vunpack.c.l.b16 %v58
    %v98 = vunpack.c.l.b16 %v59
    %v99 = vunpack.c.l.b16 %v60
    %v100 = vunpack.c.l.b16 %v61
    %v101 = vunpack.c.l.b16 %v62
    %v102 = vunpack.c.l.b16 %v63
    %v103 = vunpack.c.l.b16 %v64
    %v104 = vunpack.c.l.b16 %v65
    %v105 = vunpack.c.l.b16 %v66
    %v106 = vunpack.c.l.b16 %v67
    %v107 = vunpack.c.l.b16 %v68
    %v108 = vpack.c.b16 %v93, %v92
    %v109 = vpack.c.b16 %v95, %v94
    %v110 = vpack.c.b16 %v97, %v96
    %v111 = vpack.c.b16 %v99, %v98
    %v112 = vpack.c.b16 %v101, %v100
    %v113 = vpack.c.b16 %v103, %v102
    %v114 = vpack.c.b16 %v105, %v104
    %v115 = vpack.c.b16 %v107, %v106
    %124 = vmatprep.subr.bf16.mxu0 0
    %125 = vmatpush1.bf16.msra.mxu0 %v108
    %126 = vmatprep.subr.bf16.mxu0 0
    %127 = vmatpush1.bf16.msra.mxu0 %v109
    %128 = vmatprep.subr.bf16.mxu0 0
    %129 = vmatpush1.bf16.msra.mxu0 %v110
    %130 = vmatprep.subr.bf16.mxu0 0
    %131 = vmatpush1.bf16.msra.mxu0 %v111
    %132 = vmatprep.subr.bf16.mxu0 0
    %133 = vmatpush1.bf16.msra.mxu0 %v112
    %134 = vmatprep.subr.bf16.mxu0 0
    %135 = vmatpush1.bf16.msra.mxu0 %v113
    %136 = vmatprep.subr.bf16.mxu0 0
    %137 = vmatpush1.bf16.msra.mxu0 %v114
    %138 = vmatprep.subr.bf16.mxu0 0
    %139 = vmatpush1.bf16.msra.mxu0 %v115
    %140 = vmatprep.subr.bf16.mxu0 0
    %141 = vmatpush1.bf16.msra.mxu0 0
    %142 = vmatprep.subr.bf16.mxu0 0
    %143 = vmatpush1.bf16.msra.mxu0 0
    %144 = vmatprep.subr.bf16.mxu0 0
    %145 = vmatpush1.bf16.msra.mxu0 0
    %146 = vmatprep.subr.bf16.mxu0 0
    %147 = vmatpush1.bf16.msra.mxu0 0
    %148 = vmatprep.subr.bf16.mxu0 0
    %149 = vmatpush1.bf16.msra.mxu0 0
    %150 = vmatprep.subr.bf16.mxu0 0
    %151 = vmatpush1.bf16.msra.mxu0 0
    %152 = vmatprep.subr.bf16.mxu0 0
    %153 = vmatpush1.bf16.msra.mxu0 0
    %154 = vmatprep.subr.bf16.mxu0 0
    %155 = vmatpush1.bf16.msra.mxu0 0
    %156 = vmatprep.mubr.bf16.mxu0 0
    %157 = vmatmul.mubr.bf16.gmra.mrb[0].mxu0 %v52
    %v158 = vpop.f32.mrb[0].mxu0
    %v159 = vadd.f32 %v74, %v158
    %v160 = vpop.f32.mrb[0].mxu0
    %v161 = vpop.f32.mrb[0].mxu0
    %v162 = vadd.f32 %v74, %v161
    %v163 = vpop.f32.mrb[0].mxu0
    %164 = vdwg.mxu0
    %v165 = vmul.f32 %v159, 0.5
    %v166 = vmul.f32 %v162, 0.5
    %v167 = vmul.f32 %v159, 0.70710677
    %v168 = vmul.f32 %v162, 0.70710677
    %v169 = verf.f32.pop %v167
    %v170 = verf.f32.pop %v168
    %v171 = vadd.f32 %v169, 1.0
    %v172 = vadd.f32 %v170, 1.0
    %v173 = vmul.f32 %v165, %v171
    %v174 = vmul.f32 %v166, %v172
    %175 = vadd.xlane.f32.xlu0 %v173
    %v176 = vpop.xlane.xlu0 %175
    %177 = vadd.xlane.f32.xlu0 %v174
    %v178 = vpop.xlane.xlu0 %177
    %v179 = vrcp.pop 128.0
    %v180 = vmul.f32 %v176, %v179
    %v181 = vmul.f32 %v178, %v179
    %v182 = vsub.f32 %v173, %v180
    %v183 = vsub.f32 %v174, %v181
    %v184 = vmul.f32 %v182, %v182
    %v185 = vmul.f32 %v183, %v183
    %186 = vadd.xlane.f32.xlu0 %v184
    %v187 = vpop.xlane.xlu0 %186
    %188 = vadd.xlane.f32.xlu0 %v185
    %v189 = vpop.xlane.xlu0 %188
    %v190 = vmul.f32 %v187, %v179
    %v191 = vmul.f32 %v189, %v179
    %v192 = vadd.f32 %v190, 1e-12
    %v193 = vadd.f32 %v191, 1e-12
    %v194 = vrsqrt.pop %v192
    %v195 = vrsqrt.pop %v193
    %v196 = vmul.f32 %v182, %v194
    %v197 = vmul.f32 %v183, %v195
    %v198 = vld [vmem:[%s3] sm:$0x1]
    %v200 = vlaneseq
    %v201 = vshrl.u32 %v200, 7
    %v202 = vsub.s32 0, %v201
    %v203 = vrot.slane %v198, %v202
    %v205 = vmul.f32 %v196, %v203
    %v206 = vmul.f32 %v197, %v203
    %v207 = vld [vmem:[%s4] sm:$0x1]
    %v209 = vlaneseq
    %v210 = vshrl.u32 %v209, 7
    %v211 = vsub.s32 0, %v210
    %v212 = vrot.slane %v207, %v211
    %v214 = vadd.f32 %v205, %v212
    %v215 = vadd.f32 %v206, %v212
    %216 = vst [vmem:[#allocation7] sm:$0xff] %v214
    %217 = vst [vmem:[#allocation7 + $0x8] sm:$0xff] %v215
    // Predicated region
    $region30: #{bert_prediction_head_transform.1} parent=1 // pred_check
      _
    $region31: #{bert_prediction_head_transform.1} parent=1 // pred_check_branch
      %219 = sbr.rel (0) target = $region33
    $region32: #{bert_prediction_head_transform.1} parent=1 // pred_region
      %s221 = ssub.s32 256, 256
      %222 = vsyncadd [#allocation4], %s221
      %s223 = sshll.u32 [#allocation7], 4
      %s224 = int_to_ptr.vmem [resolvable:$true] %s223
      %229 = dma.vmem_to_hbm [thread:$0]  %s224, 256, %s5, [#allocation4], 128, 128, 8
    $region33: #{bert_prediction_head_transform.1} parent=1 // pred_fallthru
      _
    // Predicated region
    $region34: #{bert_prediction_head_transform.1} parent=1 // pred_check
      _
    $region35: #{bert_prediction_head_transform.1} parent=1 // pred_check_branch
      %231 = sbr.rel (0) target = $region37
    $region36: #{bert_prediction_head_transform.1} parent=1 // pred_region
      %232 = dma.done [#allocation4], 256
    $region37: #{bert_prediction_head_transform.1} parent=1 // pred_fallthru
      _
    %233 = vsyncpa [#allocation3], 1
    %234 = vsyncpa [#allocation6], 1
    %235 = vsyncpa [#allocation4], 1

</llo_original>
